<compile_context>
chip_gen: v7x
topology: tpu7x:2x2x1
jax: 0.10.0
libtpu: 0.0.40
codegen_flags: <defaults>
</compile_context>

<pallas_src>
import jax
import jax.numpy as jnp
from jax.experimental import pallas as pl
from jax.experimental.pallas import tpu as pltpu

IN_FEATURES = 768
LANE = 128        # lane width (last-dim alignment)
SUBLANE = 8       # f32 sublane width (second-to-last-dim alignment)
TARGET_TB = 1024  # max batch-tile rows (VMEM-safe on all generations)


def _round_up(x, m):
    return (x + m - 1) // m * m


def linear_kernel(x_ref, w_ref, b_ref, o_ref):
    # One MXU matmul per batch tile; f32 accumulation regardless of x dtype.
    acc = jnp.dot(x_ref[...], w_ref[...], preferred_element_type=jnp.float32)
    c = o_ref.shape[1]
    # Slice the accumulator to the true class width, add the f32 bias, and
    # store (masked vst; the store slot is not the bottleneck here).
    o_ref[...] = (acc[:, :c] + b_ref[...]).astype(o_ref.dtype)


@jax.jit
def linear_forward(x, w_t, b):
    """x: [B, 768] (f32 or bf16), w_t: [768, C], b: [C] or [1, C] -> [B, C] f32."""
    B, K = x.shape
    K2, C = w_t.shape
    assert K == K2 == IN_FEATURES
    # Accept (C,) or (1, C) bias; keep the bias add in f32.
    b = jnp.reshape(b, (1, C)).astype(jnp.float32)

    # Pad only the (tiny, one-time) weight's class dim to a lane multiple so
    # the MXU sees a full-width N tile; x / bias / output stay unpadded.
    C_pad = _round_up(max(C, LANE), LANE)
    w_p = w_t.astype(x.dtype)  # compute dtype follows x — no astype of x itself
    if C_pad != C:
        w_p = jnp.pad(w_p, ((0, 0), (0, C_pad - C)))

    # Batch tile: multiple of 8 sublanes, >=2 grid steps when B >= 16, capped
    # at TARGET_TB. The ragged last tile (B % TB != 0) is handled by Pallas.
    if B <= SUBLANE:
        TB = B  # single full block: block row dim == array dim, no padding
    else:
        TB = min(TARGET_TB, _round_up(pl.cdiv(B, 2), SUBLANE))
    grid = (pl.cdiv(B, TB),)

    bytes_accessed = (
        x.size * x.dtype.itemsize          # x stream (dominant)
        + w_p.size * w_p.dtype.itemsize    # resident weight (read once)
        + b.size * 4                       # bias
        + B * C * 4                        # output writeback (true width)
    )

    return pl.pallas_call(
        linear_kernel,
        out_shape=jax.ShapeDtypeStruct((B, C), jnp.float32),
        grid_spec=pltpu.PrefetchScalarGridSpec(
            num_scalar_prefetch=0,
            grid=grid,
            in_specs=[
                # x: one batch tile per grid step (double-buffered by Pallas).
                pl.BlockSpec((TB, K), lambda i: (i, 0)),
                # weight / bias: same block every step -> stay resident in VMEM.
                pl.BlockSpec((K, C_pad), lambda i: (0, 0)),
                pl.BlockSpec((1, C), lambda i: (0, 0)),
            ],
            out_specs=pl.BlockSpec((TB, C), lambda i: (i, 0)),
        ),
        compiler_params=pltpu.CompilerParams(
            # Independent batch tiles -> shardable across v7x's 2 TensorCores;
            # harmless no-op on single-TC v5e/v6e.
            dimension_semantics=("parallel",),
            vmem_limit_bytes=32 << 20,
        ),
        cost_estimate=pl.CostEstimate(
            flops=2 * B * K * C_pad,
            transcendentals=0,
            bytes_accessed=bytes_accessed,
        ),
    )(x, w_p, b)


if __name__ == "__main__":
    num_classes = 16
    batch = 8

    key = jax.random.PRNGKey(0)
    kx, kw, kb = jax.random.split(key, 3)

    # Deterministic parameter init (matches PyTorch Linear's uniform bound).
    bound = 1.0 / (IN_FEATURES ** 0.5)
    # PyTorch stores weight as [num_classes, 768]; we keep the transposed
    # [768, num_classes] layout for the kernel's x @ W convention.
    w_t = jax.random.uniform(
        kw, (IN_FEATURES, num_classes), jnp.float32, -bound, bound
    )
    b = jax.random.uniform(kb, (1, num_classes), jnp.float32, -bound, bound)
    x = jax.random.normal(kx, (batch, IN_FEATURES), jnp.float32)

    out = jax.block_until_ready(linear_forward(x, w_t, b))

    # Sanity check against plain JAX reference.
    ref = x @ w_t + b
    assert out.shape == (batch, num_classes)
    assert jnp.allclose(out, ref, atol=1e-4, rtol=1e-4)

    print("KERNEL_OK")
</pallas_src>

<mosaic_0001>
module attributes {stable_mosaic.version = 11 : i64} {
  func.func @linear_kernel(%arg0: i32, %arg1: memref<8x768xf32, #tpu.memory_space<vmem>>, %arg2: memref<768x128xf32, #tpu.memory_space<vmem>>, %arg3: memref<1x16xf32, #tpu.memory_space<vmem>>, %arg4: memref<8x16xf32, #tpu.memory_space<vmem>>) attributes {dimension_semantics = [#tpu.dimension_semantics<parallel>], iteration_bounds = array<i64: 1>, scalar_prefetch = 0 : i64, scratch_operands = 0 : i64, tpu.core_type = #tpu.core_type<tc>, window_params = [{transform_indices = @transform_0, window_bounds = array<i64: 8, 768>}, {pipeline_mode = #tpu.pipeline_mode<synchronous>, transform_indices = @transform_1, window_bounds = array<i64: 768, 128>}, {pipeline_mode = #tpu.pipeline_mode<synchronous>, transform_indices = @transform_2, window_bounds = array<i64: 1, 16>}, {transform_indices = @transform_3, window_bounds = array<i64: 8, 16>}]} {
    %c0 = arith.constant 0 : index
    %c0_0 = arith.constant 0 : index
    %0 = vector.load %arg1[%c0, %c0_0] : memref<8x768xf32, #tpu.memory_space<vmem>>, vector<8x768xf32>
    %c0_1 = arith.constant 0 : index
    %c0_2 = arith.constant 0 : index
    %1 = vector.load %arg2[%c0_1, %c0_2] : memref<768x128xf32, #tpu.memory_space<vmem>>, vector<768x128xf32>
    %cst = arith.constant dense<0.000000e+00> : vector<8x128xf32>
    %2 = tpu.matmul %0, %1, %cst {dimension_numbers = #tpu.dot_dimension_numbers<[1], [0], [0], [1], [0, 0, 1, 1], [], []>} : vector<8x768xf32>, vector<768x128xf32>, vector<8x128xf32> -> vector<8x128xf32>
    %3 = vector.extract_strided_slice %2 {offsets = [0, 0], sizes = [8, 16], strides = [1, 1]} : vector<8x128xf32> to vector<8x16xf32>
    %c0_3 = arith.constant 0 : index
    %c0_4 = arith.constant 0 : index
    %4 = vector.load %arg3[%c0_3, %c0_4] : memref<1x16xf32, #tpu.memory_space<vmem>>, vector<1x16xf32>
    %5 = vector.broadcast %4 : vector<1x16xf32> to vector<8x16xf32>
    %6 = arith.addf %3, %5 : vector<8x16xf32>
    %c0_5 = arith.constant 0 : index
    %c0_6 = arith.constant 0 : index
    %7 = vector.load %arg4[%c0_5, %c0_6] : memref<8x16xf32, #tpu.memory_space<vmem>>, vector<8x16xf32>
    tpu.vector_store %arg4[%c0_5, %c0_6], %6 {strides = array<i32>} : memref<8x16xf32, #tpu.memory_space<vmem>>, vector<8x16xf32>,
    return
  }
  func.func @transform_0(%arg0: i32) -> (i32, i32) {
    %c0_i32 = arith.constant 0 : i32
    %c0_i32_0 = arith.constant 0 : i32
    return %arg0, %c0_i32 : i32, i32
  }
  func.func @transform_1(%arg0: i32) -> (i32, i32) {
    %c0_i32 = arith.constant 0 : i32
    %c0_i32_0 = arith.constant 0 : i32
    %c0_i32_1 = arith.constant 0 : i32
    return %c0_i32, %c0_i32_0 : i32, i32
  }
  func.func @transform_2(%arg0: i32) -> (i32, i32) {
    %c0_i32 = arith.constant 0 : i32
    %c0_i32_0 = arith.constant 0 : i32
    %c0_i32_1 = arith.constant 0 : i32
    return %c0_i32, %c0_i32_0 : i32, i32
  }
  func.func @transform_3(%arg0: i32) -> (i32, i32) {
    %c0_i32 = arith.constant 0 : i32
    %c0_i32_0 = arith.constant 0 : i32
    return %arg0, %c0_i32 : i32, i32
  }
}

</mosaic_0001>

<llo_original>
// kernel: linear_forward.1
$region0: #{linear_forward.1}
  #allocation0 [shape = 'u32[]', space=smem, size = 0x4, offset = 0x4, fixed_abs, tag = 'smem constant byte address 0x4 - core index']
  #allocation1 [shape = 'u32[144,128]{1,0:T(1,128)}', space=vmem, size = 0x12000, scoped, tag = 'internal scratch']
  %s0 = inlined_call_operand.vmem [shape: f32[8,768], index: 0, kind: input, shape index: {}]
  %s1 = inlined_call_operand.vmem [shape: f32[768,128], index: 1, kind: input, shape index: {}]
  %s2 = inlined_call_operand.vmem [shape: f32[1,16], index: 2, kind: input, shape index: {}]
  %s3 = inlined_call_operand.hbm [shape: f32[8,16], index: 3, kind: output, shape index: {}]
  %s4 = sld [smem:[#allocation0]]
  $region22: #{linear_forward.1} parent=0
    _
  %s6 = ssub.s32 1, %s4
  %s7 = scalar_select 0, %s6, %s4
  $region1: #{linear_forward.1} parent=0
    #allocation2 [shape = 'u8[4096]{0}', space=vmem, size = 0x1000, scoped, tag = 'output window, operand 0, single buffered']
    #allocation3 [shape = 's32[1]{0}', space=sflag, size = 0x4, scoped, tag = 'scoped memory for linear_forward.1']
    %8 = vsyncpa [#allocation3], 0
    // Predicated region
    $region2: #{linear_forward.1} parent=1 // pred_check
      _
    $region3: #{linear_forward.1} parent=1 // pred_check_branch
      %10 = sbr.rel (0) target = $region5
    $region4: #{linear_forward.1} parent=1 // pred_region
      _
    $region5: #{linear_forward.1} parent=1 // pred_fallthru
      _
    // Predicated region
    $region6: #{linear_forward.1} parent=1 // pred_check
      _
    $region7: #{linear_forward.1} parent=1 // pred_check_branch
      %12 = sbr.rel (0) target = $region9
    $region8: #{linear_forward.1} parent=1 // pred_region
      _
    $region9: #{linear_forward.1} parent=1 // pred_fallthru
      _
    // Predicated region
    $region10: #{linear_forward.1} parent=1 // pred_check
      _
    $region11: #{linear_forward.1} parent=1 // pred_check_branch
      %14 = sbr.rel (0) target = $region13
    $region12: #{linear_forward.1} parent=1 // pred_region
      _
    $region13: #{linear_forward.1} parent=1 // pred_fallthru
      _
    %v15 = vld [vmem:[%s0] sm:$0xff]
    %v16 = vld [vmem:[%s0 + $0x8] sm:$0xff]
    %v17 = vld [vmem:[%s0 + $0x10] sm:$0xff]
    %v18 = vld [vmem:[%s0 + $0x18] sm:$0xff]
    %v19 = vld [vmem:[%s0 + $0x20] sm:$0xff]
    %v20 = vld [vmem:[%s0 + $0x28] sm:$0xff]
    %v21 = vld [vmem:[%s1] sm:$0xff]
    %v22 = vld [vmem:[%s1 + $0x8] sm:$0xff]
    %v23 = vld [vmem:[%s1 + $0x10] sm:$0xff]
    %v24 = vld [vmem:[%s1 + $0x18] sm:$0xff]
    %v25 = vld [vmem:[%s1 + $0x20] sm:$0xff]
    %v26 = vld [vmem:[%s1 + $0x28] sm:$0xff]
    %v27 = vld [vmem:[%s1 + $0x30] sm:$0xff]
    %v28 = vld [vmem:[%s1 + $0x38] sm:$0xff]
    %v29 = vld [vmem:[%s1 + $0x40] sm:$0xff]
    %v30 = vld [vmem:[%s1 + $0x48] sm:$0xff]
    %v31 = vld [vmem:[%s1 + $0x50] sm:$0xff]
    %v32 = vld [vmem:[%s1 + $0x58] sm:$0xff]
    %v33 = vld [vmem:[%s1 + $0x60] sm:$0xff]
    %v34 = vld [vmem:[%s1 + $0x68] sm:$0xff]
    %v35 = vld [vmem:[%s1 + $0x70] sm:$0xff]
    %v36 = vld [vmem:[%s1 + $0x78] sm:$0xff]
    %v37 = vld [vmem:[%s1 + $0x80] sm:$0xff]
    %v38 = vld [vmem:[%s1 + $0x88] sm:$0xff]
    %v39 = vld [vmem:[%s1 + $0x90] sm:$0xff]
    %v40 = vld [vmem:[%s1 + $0x98] sm:$0xff]
    %v41 = vld [vmem:[%s1 + $0xa0] sm:$0xff]
    %v42 = vld [vmem:[%s1 + $0xa8] sm:$0xff]
    %v43 = vld [vmem:[%s1 + $0xb0] sm:$0xff]
    %v44 = vld [vmem:[%s1 + $0xb8] sm:$0xff]
    %v45 = vld [vmem:[%s1 + $0xc0] sm:$0xff]
    %v46 = vld [vmem:[%s1 + $0xc8] sm:$0xff]
    %v47 = vld [vmem:[%s1 + $0xd0] sm:$0xff]
    %v48 = vld [vmem:[%s1 + $0xd8] sm:$0xff]
    %v49 = vld [vmem:[%s1 + $0xe0] sm:$0xff]
    %v50 = vld [vmem:[%s1 + $0xe8] sm:$0xff]
    %v51 = vld [vmem:[%s1 + $0xf0] sm:$0xff]
    %v52 = vld [vmem:[%s1 + $0xf8] sm:$0xff]
    %v53 = vld [vmem:[%s1 + $0x100] sm:$0xff]
    %v54 = vld [vmem:[%s1 + $0x108] sm:$0xff]
    %v55 = vld [vmem:[%s1 + $0x110] sm:$0xff]
    %v56 = vld [vmem:[%s1 + $0x118] sm:$0xff]
    %v57 = vld [vmem:[%s1 + $0x120] sm:$0xff]
    %v58 = vld [vmem:[%s1 + $0x128] sm:$0xff]
    %v59 = vld [vmem:[%s1 + $0x130] sm:$0xff]
    %v60 = vld [vmem:[%s1 + $0x138] sm:$0xff]
    %v61 = vld [vmem:[%s1 + $0x140] sm:$0xff]
    %v62 = vld [vmem:[%s1 + $0x148] sm:$0xff]
    %v63 = vld [vmem:[%s1 + $0x150] sm:$0xff]
    %v64 = vld [vmem:[%s1 + $0x158] sm:$0xff]
    %v65 = vld [vmem:[%s1 + $0x160] sm:$0xff]
    %v66 = vld [vmem:[%s1 + $0x168] sm:$0xff]
    %v67 = vld [vmem:[%s1 + $0x170] sm:$0xff]
    %v68 = vld [vmem:[%s1 + $0x178] sm:$0xff]
    %v69 = vld [vmem:[%s1 + $0x180] sm:$0xff]
    %v70 = vld [vmem:[%s1 + $0x188] sm:$0xff]
    %v71 = vld [vmem:[%s1 + $0x190] sm:$0xff]
    %v72 = vld [vmem:[%s1 + $0x198] sm:$0xff]
    %v73 = vld [vmem:[%s1 + $0x1a0] sm:$0xff]
    %v74 = vld [vmem:[%s1 + $0x1a8] sm:$0xff]
    %v75 = vld [vmem:[%s1 + $0x1b0] sm:$0xff]
    %v76 = vld [vmem:[%s1 + $0x1b8] sm:$0xff]
    %v77 = vld [vmem:[%s1 + $0x1c0] sm:$0xff]
    %v78 = vld [vmem:[%s1 + $0x1c8] sm:$0xff]
    %v79 = vld [vmem:[%s1 + $0x1d0] sm:$0xff]
    %v80 = vld [vmem:[%s1 + $0x1d8] sm:$0xff]
    %v81 = vld [vmem:[%s1 + $0x1e0] sm:$0xff]
    %v82 = vld [vmem:[%s1 + $0x1e8] sm:$0xff]
    %v83 = vld [vmem:[%s1 + $0x1f0] sm:$0xff]
    %v84 = vld [vmem:[%s1 + $0x1f8] sm:$0xff]
    %v85 = vld [vmem:[%s1 + $0x200] sm:$0xff]
    %v86 = vld [vmem:[%s1 + $0x208] sm:$0xff]
    %v87 = vld [vmem:[%s1 + $0x210] sm:$0xff]
    %v88 = vld [vmem:[%s1 + $0x218] sm:$0xff]
    %v89 = vld [vmem:[%s1 + $0x220] sm:$0xff]
    %v90 = vld [vmem:[%s1 + $0x228] sm:$0xff]
    %v91 = vld [vmem:[%s1 + $0x230] sm:$0xff]
    %v92 = vld [vmem:[%s1 + $0x238] sm:$0xff]
    %v93 = vld [vmem:[%s1 + $0x240] sm:$0xff]
    %v94 = vld [vmem:[%s1 + $0x248] sm:$0xff]
    %v95 = vld [vmem:[%s1 + $0x250] sm:$0xff]
    %v96 = vld [vmem:[%s1 + $0x258] sm:$0xff]
    %v97 = vld [vmem:[%s1 + $0x260] sm:$0xff]
    %v98 = vld [vmem:[%s1 + $0x268] sm:$0xff]
    %v99 = vld [vmem:[%s1 + $0x270] sm:$0xff]
    %v100 = vld [vmem:[%s1 + $0x278] sm:$0xff]
    %v101 = vld [vmem:[%s1 + $0x280] sm:$0xff]
    %v102 = vld [vmem:[%s1 + $0x288] sm:$0xff]
    %v103 = vld [vmem:[%s1 + $0x290] sm:$0xff]
    %v104 = vld [vmem:[%s1 + $0x298] sm:$0xff]
    %v105 = vld [vmem:[%s1 + $0x2a0] sm:$0xff]
    %v106 = vld [vmem:[%s1 + $0x2a8] sm:$0xff]
    %v107 = vld [vmem:[%s1 + $0x2b0] sm:$0xff]
    %v108 = vld [vmem:[%s1 + $0x2b8] sm:$0xff]
    %v109 = vld [vmem:[%s1 + $0x2c0] sm:$0xff]
    %v110 = vld [vmem:[%s1 + $0x2c8] sm:$0xff]
    %v111 = vld [vmem:[%s1 + $0x2d0] sm:$0xff]
    %v112 = vld [vmem:[%s1 + $0x2d8] sm:$0xff]
    %v113 = vld [vmem:[%s1 + $0x2e0] sm:$0xff]
    %v114 = vld [vmem:[%s1 + $0x2e8] sm:$0xff]
    %v115 = vld [vmem:[%s1 + $0x2f0] sm:$0xff]
    %v116 = vld [vmem:[%s1 + $0x2f8] sm:$0xff]
    %117 = vmatprep.subr.mxu0 0.0
    %118 = vmatpush1.msra.mxu0 %v21
    %119 = vmatprep.subr.mxu0 0.0
    %120 = vmatpush1.msra.mxu0 %v22
    %121 = vmatprep.subr.mxu0 0.0
    %122 = vmatpush1.msra.mxu0 %v23
    %123 = vmatprep.subr.mxu0 0.0
    %124 = vmatpush1.msra.mxu0 %v24
    %125 = vmatprep.subr.mxu0 0.0
    %126 = vmatpush1.msra.mxu0 %v25
    %127 = vmatprep.subr.mxu0 0.0
    %128 = vmatpush1.msra.mxu0 %v26
    %129 = vmatprep.subr.mxu0 0.0
    %130 = vmatpush1.msra.mxu0 %v27
    %131 = vmatprep.subr.mxu0 0.0
    %132 = vmatpush1.msra.mxu0 %v28
    %133 = vmatprep.subr.mxu0 0.0
    %134 = vmatpush1.msra.mxu0 %v29
    %135 = vmatprep.subr.mxu0 0.0
    %136 = vmatpush1.msra.mxu0 %v30
    %137 = vmatprep.subr.mxu0 0.0
    %138 = vmatpush1.msra.mxu0 %v31
    %139 = vmatprep.subr.mxu0 0.0
    %140 = vmatpush1.msra.mxu0 %v32
    %141 = vmatprep.subr.mxu0 0.0
    %142 = vmatpush1.msra.mxu0 %v33
    %143 = vmatprep.subr.mxu0 0.0
    %144 = vmatpush1.msra.mxu0 %v34
    %145 = vmatprep.subr.mxu0 0.0
    %146 = vmatpush1.msra.mxu0 %v35
    %147 = vmatprep.subr.mxu0 0.0
    %148 = vmatpush1.msra.mxu0 %v36
    %149 = vmatprep.subr.mxu0 0.0
    %150 = vmatpush1.msra.mxu0 %v37
    %151 = vmatprep.subr.mxu0 0.0
    %152 = vmatpush1.msra.mxu0 %v38
    %153 = vmatprep.subr.mxu0 0.0
    %154 = vmatpush1.msra.mxu0 %v39
    %155 = vmatprep.subr.mxu0 0.0
    %156 = vmatpush1.msra.mxu0 %v40
    %157 = vmatprep.subr.mxu0 0.0
    %158 = vmatpush1.msra.mxu0 %v41
    %159 = vmatprep.subr.mxu0 0.0
    %160 = vmatpush1.msra.mxu0 %v42
    %161 = vmatprep.subr.mxu0 0.0
    %162 = vmatpush1.msra.mxu0 %v43
    %163 = vmatprep.subr.mxu0 0.0
    %164 = vmatpush1.msra.mxu0 %v44
    %165 = vmatprep.subr.mxu0 0.0
    %166 = vmatpush1.msra.mxu0 %v45
    %167 = vmatprep.subr.mxu0 0.0
    %168 = vmatpush1.msra.mxu0 %v46
    %169 = vmatprep.subr.mxu0 0.0
    %170 = vmatpush1.msra.mxu0 %v47
    %171 = vmatprep.subr.mxu0 0.0
    %172 = vmatpush1.msra.mxu0 %v48
    %173 = vmatprep.subr.mxu0 0.0
    %174 = vmatpush1.msra.mxu0 %v49
    %175 = vmatprep.subr.mxu0 0.0
    %176 = vmatpush1.msra.mxu0 %v50
    %177 = vmatprep.subr.mxu0 0.0
    %178 = vmatpush1.msra.mxu0 %v51
    %179 = vmatprep.subr.mxu0 0.0
    %180 = vmatpush1.msra.mxu0 %v52
    %181 = vmatprep.mubr.f32.mxu0 %v16
    %182 = vmatmul.mubr.f32.gmra.mrb[0].mxu0 %v15
    %v183 = vpop.f32.mrb[0].mxu0
    %v184 = vadd.f32 0.0, %v183
    %v185 = vpop.f32.mrb[0].mxu0
    %186 = vdwg.mxu0
    %187 = vmatprep.subr.mxu0 0.0
    %188 = vmatpush1.msra.mxu0 %v53
    %189 = vmatprep.subr.mxu0 0.0
    %190 = vmatpush1.msra.mxu0 %v54
    %191 = vmatprep.subr.mxu0 0.0
    %192 = vmatpush1.msra.mxu0 %v55
    %193 = vmatprep.subr.mxu0 0.0
    %194 = vmatpush1.msra.mxu0 %v56
    %195 = vmatprep.subr.mxu0 0.0
    %196 = vmatpush1.msra.mxu0 %v57
    %197 = vmatprep.subr.mxu0 0.0
    %198 = vmatpush1.msra.mxu0 %v58
    %199 = vmatprep.subr.mxu0 0.0
    %200 = vmatpush1.msra.mxu0 %v59
    %201 = vmatprep.subr.mxu0 0.0
    %202 = vmatpush1.msra.mxu0 %v60
    %203 = vmatprep.subr.mxu0 0.0
    %204 = vmatpush1.msra.mxu0 %v61
    %205 = vmatprep.subr.mxu0 0.0
    %206 = vmatpush1.msra.mxu0 %v62
    %207 = vmatprep.subr.mxu0 0.0
    %208 = vmatpush1.msra.mxu0 %v63
    %209 = vmatprep.subr.mxu0 0.0
    %210 = vmatpush1.msra.mxu0 %v64
    %211 = vmatprep.subr.mxu0 0.0
    %212 = vmatpush1.msra.mxu0 %v65
    %213 = vmatprep.subr.mxu0 0.0
    %214 = vmatpush1.msra.mxu0 %v66
    %215 = vmatprep.subr.mxu0 0.0
    %216 = vmatpush1.msra.mxu0 %v67
    %217 = vmatprep.subr.mxu0 0.0
    %218 = vmatpush1.msra.mxu0 %v68
    %219 = vmatprep.subr.mxu0 0.0
    %220 = vmatpush1.msra.mxu0 %v69
    %221 = vmatprep.subr.mxu0 0.0
    %222 = vmatpush1.msra.mxu0 %v70
    %223 = vmatprep.subr.mxu0 0.0
    %224 = vmatpush1.msra.mxu0 %v71
    %225 = vmatprep.subr.mxu0 0.0
    %226 = vmatpush1.msra.mxu0 %v72
    %227 = vmatprep.subr.mxu0 0.0
    %228 = vmatpush1.msra.mxu0 %v73
    %229 = vmatprep.subr.mxu0 0.0
    %230 = vmatpush1.msra.mxu0 %v74
    %231 = vmatprep.subr.mxu0 0.0
    %232 = vmatpush1.msra.mxu0 %v75
    %233 = vmatprep.subr.mxu0 0.0
    %234 = vmatpush1.msra.mxu0 %v76
    %235 = vmatprep.subr.mxu0 0.0
    %236 = vmatpush1.msra.mxu0 %v77
    %237 = vmatprep.subr.mxu0 0.0
    %238 = vmatpush1.msra.mxu0 %v78
    %239 = vmatprep.subr.mxu0 0.0
    %240 = vmatpush1.msra.mxu0 %v79
    %241 = vmatprep.subr.mxu0 0.0
    %242 = vmatpush1.msra.mxu0 %v80
    %243 = vmatprep.subr.mxu0 0.0
    %244 = vmatpush1.msra.mxu0 %v81
    %245 = vmatprep.subr.mxu0 0.0
    %246 = vmatpush1.msra.mxu0 %v82
    %247 = vmatprep.subr.mxu0 0.0
    %248 = vmatpush1.msra.mxu0 %v83
    %249 = vmatprep.subr.mxu0 0.0
    %250 = vmatpush1.msra.mxu0 %v84
    %251 = vmatprep.mubr.f32.mxu0 %v18
    %252 = vmatmul.mubr.f32.gmra.mrb[0].mxu0 %v17
    %v253 = vpop.f32.mrb[0].mxu0
    %v254 = vadd.f32 %v184, %v253
    %v255 = vpop.f32.mrb[0].mxu0
    %256 = vdwg.mxu0
    %257 = vmatprep.subr.mxu0 0.0
    %258 = vmatpush1.msra.mxu0 %v85
    %259 = vmatprep.subr.mxu0 0.0
    %260 = vmatpush1.msra.mxu0 %v86
    %261 = vmatprep.subr.mxu0 0.0
    %262 = vmatpush1.msra.mxu0 %v87
    %263 = vmatprep.subr.mxu0 0.0
    %264 = vmatpush1.msra.mxu0 %v88
    %265 = vmatprep.subr.mxu0 0.0
    %266 = vmatpush1.msra.mxu0 %v89
    %267 = vmatprep.subr.mxu0 0.0
    %268 = vmatpush1.msra.mxu0 %v90
    %269 = vmatprep.subr.mxu0 0.0
    %270 = vmatpush1.msra.mxu0 %v91
    %271 = vmatprep.subr.mxu0 0.0
    %272 = vmatpush1.msra.mxu0 %v92
    %273 = vmatprep.subr.mxu0 0.0
    %274 = vmatpush1.msra.mxu0 %v93
    %275 = vmatprep.subr.mxu0 0.0
    %276 = vmatpush1.msra.mxu0 %v94
    %277 = vmatprep.subr.mxu0 0.0
    %278 = vmatpush1.msra.mxu0 %v95
    %279 = vmatprep.subr.mxu0 0.0
    %280 = vmatpush1.msra.mxu0 %v96
    %281 = vmatprep.subr.mxu0 0.0
    %282 = vmatpush1.msra.mxu0 %v97
    %283 = vmatprep.subr.mxu0 0.0
    %284 = vmatpush1.msra.mxu0 %v98
    %285 = vmatprep.subr.mxu0 0.0
    %286 = vmatpush1.msra.mxu0 %v99
    %287 = vmatprep.subr.mxu0 0.0
    %288 = vmatpush1.msra.mxu0 %v100
    %289 = vmatprep.subr.mxu0 0.0
    %290 = vmatpush1.msra.mxu0 %v101
    %291 = vmatprep.subr.mxu0 0.0
    %292 = vmatpush1.msra.mxu0 %v102
    %293 = vmatprep.subr.mxu0 0.0
    %294 = vmatpush1.msra.mxu0 %v103
    %295 = vmatprep.subr.mxu0 0.0
    %296 = vmatpush1.msra.mxu0 %v104
    %297 = vmatprep.subr.mxu0 0.0
    %298 = vmatpush1.msra.mxu0 %v105
    %299 = vmatprep.subr.mxu0 0.0
    %300 = vmatpush1.msra.mxu0 %v106
    %301 = vmatprep.subr.mxu0 0.0
    %302 = vmatpush1.msra.mxu0 %v107
    %303 = vmatprep.subr.mxu0 0.0
    %304 = vmatpush1.msra.mxu0 %v108
    %305 = vmatprep.subr.mxu0 0.0
    %306 = vmatpush1.msra.mxu0 %v109
    %307 = vmatprep.subr.mxu0 0.0
    %308 = vmatpush1.msra.mxu0 %v110
    %309 = vmatprep.subr.mxu0 0.0
    %310 = vmatpush1.msra.mxu0 %v111
    %311 = vmatprep.subr.mxu0 0.0
    %312 = vmatpush1.msra.mxu0 %v112
    %313 = vmatprep.subr.mxu0 0.0
    %314 = vmatpush1.msra.mxu0 %v113
    %315 = vmatprep.subr.mxu0 0.0
    %316 = vmatpush1.msra.mxu0 %v114
    %317 = vmatprep.subr.mxu0 0.0
    %318 = vmatpush1.msra.mxu0 %v115
    %319 = vmatprep.subr.mxu0 0.0
    %320 = vmatpush1.msra.mxu0 %v116
    %321 = vmatprep.mubr.f32.mxu0 %v20
    %322 = vmatmul.mubr.f32.gmra.mrb[0].mxu0 %v19
    %v323 = vpop.f32.mrb[0].mxu0
    %v324 = vadd.f32 %v254, %v323
    %v325 = vpop.f32.mrb[0].mxu0
    %326 = vdwg.mxu0
    %v327 = vld [vmem:[%s2] sm:$0x1]
    %v329 = vlaneseq
    %v330 = vshrl.u32 %v329, 7
    %v331 = vsub.s32 0, %v330
    %v332 = vrot.slane %v327, %v331
    %v334 = vadd.f32 %v324, %v332
    %vm335 = vcmask 130048
    %336 = vst.msk [vmem:[#allocation2] sm:$0xff] %vm335, %v334
    // Predicated region
    $region14: #{linear_forward.1} parent=1 // pred_check
      _
    $region15: #{linear_forward.1} parent=1 // pred_check_branch
      %338 = sbr.rel (0) target = $region17
    $region16: #{linear_forward.1} parent=1 // pred_region
      %s340 = ssub.s32 128, 128
      %341 = vsyncadd [#allocation3], %s340
      %s343 = sshll.u32 [#allocation2], 4
      %s344 = int_to_ptr.vmem [resolvable:$true] %s343
      %346 = dma.vmem_to_hbm [thread:$0]  %s344, 128, %s3, [#allocation3]
    $region17: #{linear_forward.1} parent=1 // pred_fallthru
      _
    // Predicated region
    $region18: #{linear_forward.1} parent=1 // pred_check
      _
    $region19: #{linear_forward.1} parent=1 // pred_check_branch
      %348 = sbr.rel (0) target = $region21
    $region20: #{linear_forward.1} parent=1 // pred_region
      %349 = dma.done [#allocation3], 128
    $region21: #{linear_forward.1} parent=1 // pred_fallthru
      _
    %350 = vsyncpa [#allocation3], 1

</llo_original>
